<compile_context>
chip_gen: v6e
topology: v6e:2x2x1
jax: 0.10.0
libtpu: 0.0.40
codegen_flags: <defaults>
</compile_context>

<pallas_src>
import functools

import jax
import jax.numpy as jnp
from jax.experimental import pallas as pl
from jax.experimental.pallas import tpu as pltpu


# ---------------------------------------------------------------------------
# fastai-style embedding size rule (matches get_emb_sz_list semantics)
# ---------------------------------------------------------------------------
def emb_sz_rule(n_cat: int) -> int:
    return int(min(600, round(1.6 * n_cat ** 0.56)))


def get_emb_sz_list(dims):
    return [(d, emb_sz_rule(d)) for d in dims]


def _round_up(x: int, m: int) -> int:
    return ((x + m - 1) // m) * m


def _cdiv(a: int, b: int) -> int:
    return -(-a // b)


# ---------------------------------------------------------------------------
# Pallas kernel: grouped block-diagonal multi-hot gather on the MXU,
# single concatenated bf16 output per batch tile.
# ---------------------------------------------------------------------------
def _embedding_concat_kernel(*refs, groups):
    # refs = (idx_ref, w_group_0, ..., w_group_{G-1}, out_ref)
    #   idx_ref   : VMEM int32 [TB, F]
    #   w_group_g : VMEM bf16  [sum V_f, sum D_f]  (block-diagonal, VMEM-resident)
    #   out_ref   : VMEM bf16  [TB, D_total]
    n_groups = len(groups)
    idx_ref = refs[0]
    w_refs = refs[1:1 + n_groups]
    out_ref = refs[1 + n_groups]

    tb = idx_ref.shape[0]
    idx = idx_ref[...]                                   # one [TB, F] load per tile

    for g, (feat_ids, vsizes, v_sum, d_sum, d_off) in enumerate(groups):
        # One shared iota per group; per-feature compares OR-ed, one cast to bf16.
        row_ids = jax.lax.broadcasted_iota(jnp.int32, (tb, v_sum), 1)
        hot = None
        v_off = 0
        for f, v in zip(feat_ids, vsizes):
            gid = jnp.clip(idx[:, f:f + 1], 0, v - 1) + v_off   # clamp like jnp.take
            eq = row_ids == gid
            hot = eq if hot is None else jnp.logical_or(hot, eq)
            v_off += v
        multihot = hot.astype(jnp.bfloat16)              # no f32 intermediate

        # Block-diagonal table => multi-hot matmul yields the concatenated
        # per-feature embedding rows exactly (f32 accumulation).
        res = jnp.dot(multihot, w_refs[g][...], preferred_element_type=jnp.float32)
        out_ref[:, d_off:d_off + d_sum] = res.astype(out_ref.dtype)


# ---------------------------------------------------------------------------
# Module wrapper (JAX/Pallas equivalent of EmbeddingModule, EmbeddingType.Normal)
# ---------------------------------------------------------------------------
class EmbeddingModulePallas:

    def __init__(self, categorical_dimensions, embedding_dropout=0.0,
                 embedding_dimensions=None, key=None,
                 group_k_target=256, group_n_target=256):
        if embedding_dimensions is None:
            self.embedding_dimensions = get_emb_sz_list(categorical_dimensions)
        else:
            self.embedding_dimensions = list(embedding_dimensions)

        # TODO(synk): embedding_dropout is a training-time op; eval forward is a
        # no-op, so it is accepted but ignored here.
        self.embedding_dropout = float(embedding_dropout)

        key = jax.random.PRNGKey(42) if key is None else key
        # Deterministic per-table init ~ N(0, 1) (matches nn.Embedding default init).
        self.tables_f32 = []
        for (ni, nf) in self.embedding_dimensions:
            key, sub = jax.random.split(key)
            self.tables_f32.append(jax.random.normal(sub, (ni, nf), dtype=jnp.float32))
        # bf16 copies fed to the kernel (a one-hot row selects exactly one bf16
        # row, so the gather itself is exact in bf16).
        self.tables_bf16 = [t.astype(jnp.bfloat16) for t in self.tables_f32]

        self.vocab_sizes = tuple(int(ni) for ni, _ in self.embedding_dimensions)
        self.emb_dims = tuple(int(nf) for _, nf in self.embedding_dimensions)
        self.d_total = int(sum(self.emb_dims))

        # ---- Feature grouping: pack consecutive features so each group's padded
        # MXU K/N stays near the target (128 on v5e, 256 on v6e/v7x; 256 default).
        groups_feats = []
        cur, cur_v, cur_d = [], 0, 0
        for f, (v, d) in enumerate(zip(self.vocab_sizes, self.emb_dims)):
            if cur and (cur_v + v > group_k_target or cur_d + d > group_n_target):
                groups_feats.append(cur)
                cur, cur_v, cur_d = [], 0, 0
            cur.append(f)
            cur_v += v
            cur_d += d
        if cur:
            groups_feats.append(cur)

        # Block-diagonal bf16 table per group + static layout metadata.
        # Groups are contiguous feature ranges, so column order matches
        # torch.cat([emb_i(x[:, i]) for i], dim=1).
        self.groups = []
        self.group_tables = []
        d_off = 0
        for feats in groups_feats:
            vsizes = tuple(self.vocab_sizes[f] for f in feats)
            dsizes = tuple(self.emb_dims[f] for f in feats)
            v_sum, d_sum = int(sum(vsizes)), int(sum(dsizes))
            w = jnp.zeros((v_sum, d_sum), dtype=jnp.bfloat16)
            vo = do = 0
            for f, v, d in zip(feats, vsizes, dsizes):
                w = w.at[vo:vo + v, do:do + d].set(self.tables_bf16[f])
                vo += v
                do += d
            self.group_tables.append(w)
            self.groups.append((tuple(feats), vsizes, v_sum, d_sum, d_off))
            d_off += d_sum
        self.groups = tuple(self.groups)

    @property
    def no_of_embeddings(self):
        return self.d_total

    def _vmem_budget_bytes(self, tb, n_feat):
        # Padded (sublane, lane) footprint of every VMEM-resident block, x2 for
        # double-buffering, plus headroom for iota/one-hot temporaries.
        def pad2(r, c, sub, lane, itemsize):
            return _round_up(r, sub) * _round_up(c, lane) * itemsize

        total = 0
        for w in self.group_tables:
            total += 2 * pad2(w.shape[0], w.shape[1], 16, 128, 2)   # bf16 tables
        total += 2 * pad2(tb, n_feat, 8, 128, 4)                    # int32 idx block
        total += 2 * pad2(tb, self.d_total, 16, 128, 2)             # bf16 out block
        total = 2 * total + (8 << 20)                               # temps / margin
        return int(min(max(total, 16 << 20), 64 << 20))

    def __call__(self, categorical_data, *, batch_tile=1024):
        b, n_feat = categorical_data.shape
        assert n_feat == len(self.embedding_dimensions)
        assert batch_tile % 16 == 0, "batch_tile must be a multiple of 16 (bf16 sublane tile)"
        idx = categorical_data.astype(jnp.int32)

        # Batch tiling: TB rows per grid step, 16-aligned (bf16 sublane tile).
        tb = min(_round_up(b, 16), batch_tile)
        if b > 16:
            # Keep >= 2 grid steps so both TensorCores get work on v7x megacore.
            tb = min(tb, _round_up(_cdiv(b, 2), 16))
        b_pad = _round_up(b, tb)
        if b_pad != b:
            # Padded rows use id 0 (clamped in-kernel) and are sliced off below.
            idx = jnp.pad(idx, ((0, b_pad - b), (0, 0)))

        kernel = functools.partial(_embedding_concat_kernel, groups=self.groups)

        in_specs = [pl.BlockSpec((tb, n_feat), lambda i: (i, 0))]
        # Group tables: full-array blocks, constant index_map -> VMEM-resident
        # across all batch tiles.
        # TODO(synk): pipeline_mode=pl.Buffered(1) would single-buffer these
        # constant-index blocks (halves their VMEM on v7x); left off pending
        # verification that buffer_count=1 is accepted by the Mosaic pipeliner.
        in_specs += [pl.BlockSpec(tuple(w.shape), lambda i: (0, 0))
                     for w in self.group_tables]

        out_shape = jax.ShapeDtypeStruct((b_pad, self.d_total), jnp.bfloat16)
        out_specs = pl.BlockSpec((tb, self.d_total), lambda i: (i, 0))

        out = pl.pallas_call(
            kernel,
            out_shape=out_shape,
            grid=(b_pad // tb,),
            in_specs=in_specs,
            out_specs=out_specs,
            compiler_params=pltpu.CompilerParams(
                dimension_semantics=("parallel",),
                vmem_limit_bytes=self._vmem_budget_bytes(tb, n_feat)),
        )(idx, *self.group_tables)

        # Output is already the concatenated embedding slab; just drop batch padding.
        return out[:b]


# ---------------------------------------------------------------------------
# Reference (plain JAX) forward, used only for verification.
# ---------------------------------------------------------------------------
def reference_forward(module: EmbeddingModulePallas, categorical_data):
    idx = categorical_data.astype(jnp.int32)
    outs = []
    for i, (t, v) in enumerate(zip(module.tables_bf16, module.vocab_sizes)):
        ci = jnp.clip(idx[:, i], 0, v - 1)
        outs.append(jnp.take(t, ci, axis=0))
    return jnp.concatenate(outs, axis=1)   # bf16, same as kernel output


if __name__ == "__main__":
    categorical_dimensions = [10, 7, 5, 12]     # unique values per categorical feature
    module = EmbeddingModulePallas(categorical_dimensions, embedding_dropout=0.0)

    B = 20                                      # not a multiple of 16 -> exercises padding
    key = jax.random.PRNGKey(0)
    cols = []
    for ni in categorical_dimensions:
        key, sub = jax.random.split(key)
        cols.append(jax.random.randint(sub, (B, 1), 0, ni, dtype=jnp.int32))
    categorical_data = jnp.concatenate(cols, axis=1)   # [B, F] int32

    # tb is capped to keep >=2 grid steps here -> grid=(2,), pipelined "parallel" path.
    out = jax.block_until_ready(module(categorical_data))

    ref = reference_forward(module, categorical_data)
    assert out.shape == (B, module.no_of_embeddings), out.shape
    assert out.dtype == jnp.bfloat16, out.dtype
    assert jnp.allclose(out.astype(jnp.float32), ref.astype(jnp.float32),
                        atol=1e-6, rtol=0.0), "mismatch vs reference"

    print("KERNEL_OK")
</pallas_src>

<mosaic_0001>
module attributes {stable_mosaic.version = 11 : i64} {
  func.func @_embedding_concat_kernel(%arg0: i32, %arg1: memref<16x4xi32, #tpu.memory_space<vmem>>, %arg2: memref<34x21xbf16, #tpu.memory_space<vmem>>, %arg3: memref<16x21xbf16, #tpu.memory_space<vmem>>) attributes {dimension_semantics = [#tpu.dimension_semantics<parallel>], iteration_bounds = array<i64: 2>, scalar_prefetch = 0 : i64, scratch_operands = 0 : i64, tpu.core_type = #tpu.core_type<tc>, window_params = [{transform_indices = @transform_0, window_bounds = array<i64: 16, 4>}, {pipeline_mode = #tpu.pipeline_mode<synchronous>, transform_indices = @transform_1, window_bounds = array<i64: 34, 21>}, {transform_indices = @transform_2, window_bounds = array<i64: 16, 21>}]} {
    %c0 = arith.constant 0 : index
    %c0_0 = arith.constant 0 : index
    %0 = vector.load %arg1[%c0, %c0_0] : memref<16x4xi32, #tpu.memory_space<vmem>>, vector<16x4xi32>
    %1 = tpu.iota {dimensions = array<i32: 1>} : vector<16x34xi32>
    %2 = vector.extract_strided_slice %0 {offsets = [0, 0], sizes = [16, 1], strides = [1, 1]} : vector<16x4xi32> to vector<16x1xi32>
    %c0_i32 = arith.constant 0 : i32
    %c9_i32 = arith.constant 9 : i32
    %3 = vector.broadcast %c0_i32 : i32 to vector<16x1xi32>
    %4 = arith.maxsi %3, %2 : vector<16x1xi32>
    %5 = vector.broadcast %c9_i32 : i32 to vector<16x1xi32>
    %6 = arith.minsi %5, %4 : vector<16x1xi32>
    %c0_i32_1 = arith.constant 0 : i32
    %7 = vector.broadcast %c0_i32_1 : i32 to vector<16x1xi32>
    %8 = arith.addi %6, %7 : vector<16x1xi32>
    %9 = vector.broadcast %8 : vector<16x1xi32> to vector<16x34xi32>
    %10 = arith.cmpi eq, %1, %9 : vector<16x34xi32>
    %11 = vector.extract_strided_slice %0 {offsets = [0, 1], sizes = [16, 1], strides = [1, 1]} : vector<16x4xi32> to vector<16x1xi32>
    %c0_i32_2 = arith.constant 0 : i32
    %c6_i32 = arith.constant 6 : i32
    %12 = vector.broadcast %c0_i32_2 : i32 to vector<16x1xi32>
    %13 = arith.maxsi %12, %11 : vector<16x1xi32>
    %14 = vector.broadcast %c6_i32 : i32 to vector<16x1xi32>
    %15 = arith.minsi %14, %13 : vector<16x1xi32>
    %c10_i32 = arith.constant 10 : i32
    %16 = vector.broadcast %c10_i32 : i32 to vector<16x1xi32>
    %17 = arith.addi %15, %16 : vector<16x1xi32>
    %18 = vector.broadcast %17 : vector<16x1xi32> to vector<16x34xi32>
    %19 = arith.cmpi eq, %1, %18 : vector<16x34xi32>
    %20 = arith.ori %10, %19 : vector<16x34xi1>
    %21 = vector.extract_strided_slice %0 {offsets = [0, 2], sizes = [16, 1], strides = [1, 1]} : vector<16x4xi32> to vector<16x1xi32>
    %c0_i32_3 = arith.constant 0 : i32
    %c4_i32 = arith.constant 4 : i32
    %22 = vector.broadcast %c0_i32_3 : i32 to vector<16x1xi32>
    %23 = arith.maxsi %22, %21 : vector<16x1xi32>
    %24 = vector.broadcast %c4_i32 : i32 to vector<16x1xi32>
    %25 = arith.minsi %24, %23 : vector<16x1xi32>
    %c17_i32 = arith.constant 17 : i32
    %26 = vector.broadcast %c17_i32 : i32 to vector<16x1xi32>
    %27 = arith.addi %25, %26 : vector<16x1xi32>
    %28 = vector.broadcast %27 : vector<16x1xi32> to vector<16x34xi32>
    %29 = arith.cmpi eq, %1, %28 : vector<16x34xi32>
    %30 = arith.ori %20, %29 : vector<16x34xi1>
    %31 = vector.extract_strided_slice %0 {offsets = [0, 3], sizes = [16, 1], strides = [1, 1]} : vector<16x4xi32> to vector<16x1xi32>
    %c0_i32_4 = arith.constant 0 : i32
    %c11_i32 = arith.constant 11 : i32
    %32 = vector.broadcast %c0_i32_4 : i32 to vector<16x1xi32>
    %33 = arith.maxsi %32, %31 : vector<16x1xi32>
    %34 = vector.broadcast %c11_i32 : i32 to vector<16x1xi32>
    %35 = arith.minsi %34, %33 : vector<16x1xi32>
    %c22_i32 = arith.constant 22 : i32
    %36 = vector.broadcast %c22_i32 : i32 to vector<16x1xi32>
    %37 = arith.addi %35, %36 : vector<16x1xi32>
    %38 = vector.broadcast %37 : vector<16x1xi32> to vector<16x34xi32>
    %39 = arith.cmpi eq, %1, %38 : vector<16x34xi32>
    %40 = arith.ori %30, %39 : vector<16x34xi1>
    %41 = arith.extui %40 : vector<16x34xi1> to vector<16x34xi32>
    %42 = arith.sitofp %41 : vector<16x34xi32> to vector<16x34xf32>
    %43 = arith.truncf %42 : vector<16x34xf32> to vector<16x34xbf16>
    %c0_5 = arith.constant 0 : index
    %c0_6 = arith.constant 0 : index
    %44 = vector.load %arg2[%c0_5, %c0_6] : memref<34x21xbf16, #tpu.memory_space<vmem>>, vector<34x21xbf16>
    %cst = arith.constant dense<0.000000e+00> : vector<16x21xf32>
    %45 = tpu.matmul %43, %44, %cst {dimension_numbers = #tpu.dot_dimension_numbers<[1], [0], [0], [1], [0, 0, 1, 1], [], []>} : vector<16x34xbf16>, vector<34x21xbf16>, vector<16x21xf32> -> vector<16x21xf32>
    %46 = arith.truncf %45 : vector<16x21xf32> to vector<16x21xbf16>
    %c0_7 = arith.constant 0 : index
    %c0_8 = arith.constant 0 : index
    %47 = vector.load %arg3[%c0_7, %c0_8] : memref<16x21xbf16, #tpu.memory_space<vmem>>, vector<16x21xbf16>
    tpu.vector_store %arg3[%c0_7, %c0_8], %46 {strides = array<i32>} : memref<16x21xbf16, #tpu.memory_space<vmem>>, vector<16x21xbf16>,
    return
  }
  func.func @transform_0(%arg0: i32) -> (i32, i32) {
    %c0_i32 = arith.constant 0 : i32
    %c0_i32_0 = arith.constant 0 : i32
    return %arg0, %c0_i32 : i32, i32
  }
  func.func @transform_1(%arg0: i32) -> (i32, i32) {
    %c0_i32 = arith.constant 0 : i32
    %c0_i32_0 = arith.constant 0 : i32
    %c0_i32_1 = arith.constant 0 : i32
    return %c0_i32, %c0_i32_0 : i32, i32
  }
  func.func @transform_2(%arg0: i32) -> (i32, i32) {
    %c0_i32 = arith.constant 0 : i32
    %c0_i32_0 = arith.constant 0 : i32
    return %arg0, %c0_i32 : i32, i32
  }
}

</mosaic_0001>

<llo_original>
// kernel: tpu_custom_call.1
$region0: #{tpu_custom_call.1}
  #allocation0 [shape = 'u32[]', space=smem, size = 0x4, offset = 0x4, fixed_abs, tag = 'smem constant byte address 0x4 - core index']
  #allocation1 [shape = 'u32[144,128]{1,0:T(1,128)}', space=vmem, size = 0x12000, scoped, tag = 'internal scratch']
  %s0 = inlined_call_operand.vmem [shape: s32[32,4], index: 0, kind: input, shape index: {}]
  %s1 = inlined_call_operand.vmem [shape: bf16[34,21], index: 1, kind: input, shape index: {}]
  %s2 = inlined_call_operand.vmem [shape: bf16[32,21], index: 2, kind: output, shape index: {}]
  %s3 = sld [smem:[#allocation0]]
  $region41: #{tpu_custom_call.1} parent=0
    _
  %s5 = ssub.s32 1, %s3
  %s6 = scalar_select 0, %s5, %s3
  loop: start=0, step=1, limit=4
  $region2: #{tpu_custom_call.1} parent=0 // loop_pre_header
    _
  $region3: #{tpu_custom_call.1} parent=0 // loop_header
    %s8 = sphi 0, %s12
    %p9 = scmp.ge.s32.totalorder %s8, 4
    %s18 = sphi 0, %s20
    %s21 = sphi 0, %s18
    %s22 = sphi 0, %s21
    %s38 = sphi 0, %s22
    %s42 = sphi 0, %s42
    %s44 = sphi 0, %s42
    %s45 = sphi 0, %s44
    %s59 = sphi 0, %s45
    %s65 = sphi 0, %s67
    %s68 = sphi 0, %s65
    %s69 = sphi 0, %s68
    %s85 = sphi 0, %s69
  $region4: #{tpu_custom_call.1} parent=0 // loop_header_branch
    %11 = sbr.rel (%p9) target = $region8
  $region5: #{tpu_custom_call.1} parent=0 // loop_body
    %s13 = ssub.s32 %s8, 1
    %s14 = ssub.s32 %s8, 2
    %s15 = sadd.s32 %s8, 1
    %s16 = ssub.s32 %s8, %s15
    %p17 = scmp.eq.s32.totalorder %s16, 0
    %s19 = sadd.s32 %s18, 1
    %s20 = scalar_select %p17, %s18, %s19
    %p23 = pneg %p17
    %p24 = scmp.eq.s32.totalorder %s8, 1
    %p25 = por %p23, %p24
    %p26 = scmp.ne.s32.totalorder %s18, %s21
    %p27 = scmp.eq.s32.totalorder %s8, 0
    %p28 = por %p26, %p27
    %p29 = scmp.ne.s32.totalorder %s18, %s21
    %p30 = scmp.eq.s32.totalorder %s13, 1
    %p31 = por %p29, %p30
    %p32 = scmp.ne.s32.totalorder %s21, %s22
    %p33 = scmp.eq.s32.totalorder %s13, 0
    %p34 = por %p32, %p33
    %p35 = scmp.ne.s32.totalorder %s21, %s22
    %p36 = scmp.eq.s32.totalorder %s14, 1
    %p37 = por %p35, %p36
    %p39 = scmp.ne.s32.totalorder %s22, %s38
    %p40 = scmp.eq.s32.totalorder %s14, 0
    %p41 = por %p39, %p40
    %s43 = sadd.s32 %s42, 1
    %p46 = scmp.eq.s32.totalorder %s8, 1
    %p47 = scmp.ne.s32.totalorder %s42, %s44
    %p48 = scmp.eq.s32.totalorder %s8, 0
    %p49 = por %p47, %p48
    %p50 = scmp.ne.s32.totalorder %s42, %s44
    %p51 = scmp.eq.s32.totalorder %s13, 1
    %p52 = por %p50, %p51
    %p53 = scmp.ne.s32.totalorder %s44, %s45
    %p54 = scmp.eq.s32.totalorder %s13, 0
    %p55 = por %p53, %p54
    %p56 = scmp.ne.s32.totalorder %s44, %s45
    %p57 = scmp.eq.s32.totalorder %s14, 1
    %p58 = por %p56, %p57
    %p60 = scmp.ne.s32.totalorder %s45, %s59
    %p61 = scmp.eq.s32.totalorder %s14, 0
    %p62 = por %p60, %p61
    %s63 = ssub.s32 %s8, %s15
    %p64 = scmp.eq.s32.totalorder %s63, 0
    %s66 = sadd.s32 %s65, 1
    %s67 = scalar_select %p64, %s65, %s66
    %p70 = pneg %p64
    %p71 = scmp.eq.s32.totalorder %s8, 1
    %p72 = por %p70, %p71
    %p73 = scmp.ne.s32.totalorder %s65, %s68
    %p74 = scmp.eq.s32.totalorder %s8, 0
    %p75 = por %p73, %p74
    %p76 = scmp.ne.s32.totalorder %s65, %s68
    %p77 = scmp.eq.s32.totalorder %s13, 1
    %p78 = por %p76, %p77
    %p79 = scmp.ne.s32.totalorder %s68, %s69
    %p80 = scmp.eq.s32.totalorder %s13, 0
    %p81 = por %p79, %p80
    %p82 = scmp.ne.s32.totalorder %s68, %s69
    %p83 = scmp.eq.s32.totalorder %s14, 1
    %p84 = por %p82, %p83
    %p86 = scmp.ne.s32.totalorder %s69, %s85
    %p87 = scmp.eq.s32.totalorder %s14, 0
    %p88 = por %p86, %p87
    %p89 = scmp.le.s32.totalorder 1, %s8
    %p90 = scmp.lt.s32.totalorder %s8, 3
    %p91 = pnand %p89, %p90
    %p92 = pneg %p91
    // Predicated region
    $region9: #{tpu_custom_call.1} parent=5 // pred_check
      _
    $region10: #{tpu_custom_call.1} parent=5 // pred_check_branch
      %94 = sbr.rel (%p91) target = $region12
    $region11: #{tpu_custom_call.1} parent=5 // pred_region
      %s95 = ssub.s32 %s8, 1
      // Predicated region
      $region13: #{tpu_custom_call.1} parent=11 // pred_check
        %p96 = pneg %p55
      $region14: #{tpu_custom_call.1} parent=11 // pred_check_branch
        %98 = sbr.rel (%p96) target = $region16
      $region15: #{tpu_custom_call.1} parent=11 // pred_region
        _
      $region16: #{tpu_custom_call.1} parent=11 // pred_fallthru
        _
    $region12: #{tpu_custom_call.1} parent=5 // pred_fallthru
      _
    %p99 = scmp.lt.s32.totalorder %s8, 2
    // Predicated region
    $region17: #{tpu_custom_call.1} parent=5 // pred_check
      %p100 = pneg %p99
    $region18: #{tpu_custom_call.1} parent=5 // pred_check_branch
      %102 = sbr.rel (%p100) target = $region20
    $region19: #{tpu_custom_call.1} parent=5 // pred_region
      // Predicated region
      $region21: #{tpu_custom_call.1} parent=19 // pred_check
        %p103 = pneg %p28
      $region22: #{tpu_custom_call.1} parent=19 // pred_check_branch
        %105 = sbr.rel (%p103) target = $region24
      $region23: #{tpu_custom_call.1} parent=19 // pred_region
        %s106 = smul.u32 2, %s8
        %p107 = scmp.lt.s32.totalorder %s106, 3
        %s108 = scalar_select %p107, %s106, 3
        %s109 = smul.addr %s108, 8
        %s110 = scalar_lea.vmem %s0, %s109
        %s111 = smul.u32 2, %s8
      $region24: #{tpu_custom_call.1} parent=19 // pred_fallthru
        _
    $region20: #{tpu_custom_call.1} parent=5 // pred_fallthru
      _
    %p112 = scmp.le.s32.totalorder 1, %s8
    %p113 = scmp.lt.s32.totalorder %s8, 3
    %p114 = pnand %p112, %p113
    %p115 = pneg %p114
    // Predicated region
    $region25: #{tpu_custom_call.1} parent=5 // pred_check
      _
    $region26: #{tpu_custom_call.1} parent=5 // pred_check_branch
      %117 = sbr.rel (%p114) target = $region28
    $region27: #{tpu_custom_call.1} parent=5 // pred_region
      %s118 = ssub.s32 %s8, 1
      %s119 = smul.u32 2, %s13
      %p120 = scmp.lt.s32.totalorder %s119, 3
      %s121 = scalar_select %p120, %s119, 3
      %s122 = smul.addr %s121, 8
      %s123 = scalar_lea.vmem %s0, %s122
      %p124 = pneg %p34
      %p125 = pneg %p31
      %p126 = pneg %p55
      %p127 = pneg %p52
      %p128 = pneg %p81
      %p129 = pneg %p78
      %s130 = smul.u32 2, %s13
      %p131 = scmp.lt.s32.totalorder %s130, 3
      %s132 = scalar_select %p131, %s130, 3
      %s133 = smul.addr %s132, 4
      %s134 = scalar_lea.vmem %s2, %s133
      %s135 = smul.u32 2, %s13
      %p136 = scmp.lt.s32.totalorder %s135, 3
      %s137 = scalar_select %p136, %s135, 3
      %s138 = smul.addr %s137, 8
      %s139 = scalar_lea.vmem %s0, %s138
      %s140 = smul.u32 2, %s13
      %s141 = smul.u32 2, %s13
      %p142 = scmp.lt.s32.totalorder %s141, 3
      %s143 = scalar_select %p142, %s141, 3
      %s144 = smul.addr %s143, 4
      %s145 = scalar_lea.vmem %s2, %s144
      %s146 = smul.u32 2, %s13
      %v148 = vld [vmem:[%s139] sm:$0xff]
      %v149 = vld [vmem:[%s139 + $0x8] sm:$0xff]
      %v150 = vlaneseq
      %v151 = vand.u32 %v150, 127
      %vm152 = vcmp.gt.s32.totalorder %v148, 0
      %v153 = vsel %vm152, %v148, 0
      %vm154 = vcmp.gt.s32.totalorder %v149, 0
      %v155 = vsel %vm154, %v149, 0
      %vm156 = vcmp.lt.s32.totalorder %v153, 9
      %v157 = vsel %vm156, %v153, 9
      %vm158 = vcmp.lt.s32.totalorder %v155, 9
      %v159 = vsel %vm158, %v155, 9
      %160 = vset.pattern.permute.xlu0 0
      %161 = vperm.xlu0 %160, %v157
      %v162 = vpop.permute.xlu0 %161
      %163 = vset.pattern.permute.xlu0 0
      %164 = vperm.xlu0 %163, %v159
      %v165 = vpop.permute.xlu0 %164
      %vm166 = vcmp.eq.s32.totalorder %v151, %v162
      %vm167 = vcmp.eq.s32.totalorder %v151, %v165
      %vm168 = vcmp.lt.s32.totalorder %v153, 6
      %v169 = vsel %vm168, %v153, 6
      %vm170 = vcmp.lt.s32.totalorder %v155, 6
      %v171 = vsel %vm170, %v155, 6
      %v172 = vadd.s32 %v169, 10
      %v173 = vadd.s32 %v171, 10
      %174 = vset.pattern.permute.xlu0 1
      %175 = vperm.xlu0 %174, %v172
      %v176 = vpop.permute.xlu0 %175
      %177 = vset.pattern.permute.xlu0 1
      %178 = vperm.xlu0 %177, %v173
      %v179 = vpop.permute.xlu0 %178
      %vm180 = vcmp.eq.s32.totalorder %v151, %v176
      %vm181 = vcmp.eq.s32.totalorder %v151, %v179
      %vm182 = vmor %vm166, %vm180
      %vm183 = vmor %vm167, %vm181
      %vm184 = vcmp.lt.s32.totalorder %v153, 4
      %v185 = vsel %vm184, %v153, 4
      %vm186 = vcmp.lt.s32.totalorder %v155, 4
      %v187 = vsel %vm186, %v155, 4
      %v188 = vadd.s32 %v185, 17
      %v189 = vadd.s32 %v187, 17
      %190 = vset.pattern.permute.xlu0 2
      %191 = vperm.xlu0 %190, %v188
      %v192 = vpop.permute.xlu0 %191
      %193 = vset.pattern.permute.xlu0 2
      %194 = vperm.xlu0 %193, %v189
      %v195 = vpop.permute.xlu0 %194
      %vm196 = vcmp.eq.s32.totalorder %v151, %v192
      %vm197 = vcmp.eq.s32.totalorder %v151, %v195
      %vm198 = vmor %vm182, %vm196
      %vm199 = vmor %vm183, %vm197
      %vm200 = vcmp.lt.s32.totalorder %v153, 11
      %v201 = vsel %vm200, %v153, 11
      %vm202 = vcmp.lt.s32.totalorder %v155, 11
      %v203 = vsel %vm202, %v155, 11
      %v204 = vadd.s32 %v201, 22
      %v205 = vadd.s32 %v203, 22
      %206 = vset.pattern.permute.xlu0 3
      %207 = vperm.xlu0 %206, %v204
      %v208 = vpop.permute.xlu0 %207
      %209 = vset.pattern.permute.xlu0 3
      %210 = vperm.xlu0 %209, %v205
      %v211 = vpop.permute.xlu0 %210
      %vm212 = vcmp.eq.s32.totalorder %v151, %v208
      %vm213 = vcmp.eq.s32.totalorder %v151, %v211
      %vm214 = vmor %vm198, %vm212
      %vm215 = vmor %vm199, %vm213
      %v216 = vsel %vm214, 1, 0
      %v217 = vsel %vm215, 1, 0
      %v218 = vcvt.s32.f32 %v216
      %v219 = vcvt.s32.f32 %v217
      %v220 = vpack.c.bf16 %v219, %v218
      %v221 = vld [vmem:[%s1] sm:$0xf]
      %v222 = vld [vmem:[%s1 + $0x4] sm:$0xf]
      %v223 = vld [vmem:[%s1 + $0x8] sm:$0xf]
      %v224 = vld [vmem:[%s1 + $0xc] sm:$0xf]
      %v225 = vld [vmem:[%s1 + $0x10] sm:$0x1]
      %v231 = vunpack.c.l.b16 %v221
      %v232 = vunpack.c.l.b16 %v222
      %v233 = vunpack.c.l.b16 %v223
      %v234 = vunpack.c.l.b16 %v224
      %v235 = vunpack.c.l.b16 %v225
      %v236 = vpack.c.b16 %v232, %v231
      %v237 = vpack.c.b16 %v234, %v233
      %v238 = vpack.c.b16 %v235, %v235
      %vm241 = vcmask 277504
      %v243 = vsel %vm241, %v220, 0
      %vm245 = vcmask 1040384
      %v247 = vsel %vm245, %v238, 0
      %249 = vmatprep.subr.bf16.mxu0 0
      %250 = vmatpush1.bf16.msra.mxu0 0
      %251 = vmatprep.subr.bf16.mxu0 0
      %252 = vmatpush1.bf16.msra.mxu0 0
      %253 = vmatprep.subr.bf16.mxu0 0
      %254 = vmatpush1.bf16.msra.mxu0 0
      %255 = vmatprep.subr.bf16.mxu0 0
      %256 = vmatpush1.bf16.msra.mxu0 0
      %257 = vmatprep.subr.bf16.mxu0 0
      %258 = vmatpush1.bf16.msra.mxu0 0
      %259 = vmatprep.subr.bf16.mxu0 0
      %260 = vmatpush1.bf16.msra.mxu0 %v247
      %261 = vmatprep.subr.bf16.mxu0 0
      %262 = vmatpush1.bf16.msra.mxu0 %v237
      %263 = vmatprep.subr.bf16.mxu0 0
      %264 = vmatpush1.bf16.msra.mxu0 %v236
      %265 = vmatprep.subr.bf16.mxu0 0
      %266 = vmatpush2.bf16.msra.mxu0 0
      %267 = vmatprep.subr.bf16.mxu0 0
      %268 = vmatpush2.bf16.msra.mxu0 0
      %269 = vmatprep.subr.bf16.mxu0 0
      %270 = vmatpush2.bf16.msra.mxu0 0
      %271 = vmatprep.subr.bf16.mxu0 0
      %272 = vmatpush2.bf16.msra.mxu0 0
      %273 = vmatprep.subr.bf16.mxu0 0
      %274 = vmatpush2.bf16.msra.mxu0 0
      %275 = vmatprep.subr.bf16.mxu0 0
      %276 = vmatpush2.bf16.msra.mxu0 0
      %277 = vmatprep.subr.bf16.mxu0 0
      %278 = vmatpush2.bf16.msra.mxu0 0
      %279 = vmatprep.subr.bf16.mxu0 0
      %280 = vmatpush2.bf16.msra.mxu0 0
      %281 = vmatprep.mubr.bf16.mxu0 0
      %282 = vmatmul.mubr.bf16.gmra.mxu0 %v243
      %v283 = vpop.f32.mrf.mxu0
      %v284 = vadd.f32 0.0, %v283
      %v285 = vpop.f32.mrf.mxu0
      %v286 = vpop.f32.mrf.mxu0
      %v287 = vadd.f32 0.0, %v286
      %v288 = vpop.f32.mrf.mxu0
      %289 = vdwg.mxu0
      %v290 = vpack.c.bf16 %v287, %v284
      %v292 = vunpack.c.l.b16 %v290
      %v293 = vunpack.c.h.b16 %v290
      %v294 = vpack.c.b16 %v292, %v292
      %v295 = vpack.c.b16 %v293, %v293
      %vm298 = vcmask 166912
      %299 = vst.msk [vmem:[%s145] sm:$0xf] %vm298, %v294
      %300 = vst.msk [vmem:[%s145 + $0x4] sm:$0xf] %vm298, %v295
      %s301 = smul.u32 2, %s13
      %p302 = scmp.lt.s32.totalorder %s301, 3
      %s303 = scalar_select %p302, %s301, 3
      %s304 = smul.addr %s303, 4
      %s305 = scalar_lea.vmem %s2, %s304
      // Predicated region
      $region29: #{tpu_custom_call.1} parent=27 // pred_check
        %p306 = pneg %p78
      $region30: #{tpu_custom_call.1} parent=27 // pred_check_branch
        %308 = sbr.rel (%p306) target = $region32
      $region31: #{tpu_custom_call.1} parent=27 // pred_region
        %s309 = smul.u32 2, %s13
      $region32: #{tpu_custom_call.1} parent=27 // pred_fallthru
        _
    $region28: #{tpu_custom_call.1} parent=5 // pred_fallthru
      _
    %p310 = scmp.le.s32.totalorder 2, %s8
    // Predicated region
    $region33: #{tpu_custom_call.1} parent=5 // pred_check
      %p311 = pneg %p310
    $region34: #{tpu_custom_call.1} parent=5 // pred_check_branch
      %313 = sbr.rel (%p311) target = $region36
    $region35: #{tpu_custom_call.1} parent=5 // pred_region
      %s314 = ssub.s32 %s8, 2
      // Predicated region
      $region37: #{tpu_custom_call.1} parent=35 // pred_check
        %p315 = pneg %p84
      $region38: #{tpu_custom_call.1} parent=35 // pred_check_branch
        %317 = sbr.rel (%p315) target = $region40
      $region39: #{tpu_custom_call.1} parent=35 // pred_region
        %s318 = smul.u32 2, %s14
        %p319 = scmp.lt.s32.totalorder %s318, 3
        %s320 = scalar_select %p319, %s318, 3
        %s321 = smul.addr %s320, 4
        %s322 = scalar_lea.vmem %s2, %s321
      $region40: #{tpu_custom_call.1} parent=35 // pred_fallthru
        _
    $region36: #{tpu_custom_call.1} parent=5 // pred_fallthru
      _
  $region6: #{tpu_custom_call.1} parent=0 // loop_footer
    %s12 = sadd.s32 1, %s8
  $region7: #{tpu_custom_call.1} parent=0 // loop_footer_branch
    %7 = sbr.rel target = $region3
  $region8: #{tpu_custom_call.1} parent=0 // loop_exit
    _

</llo_original>
